<compile_context>
chip_gen: v5e
topology: v5e:2x2
jax: 0.10.0
libtpu: 0.0.40
codegen_flags: <defaults>
</compile_context>

<pallas_src>
import jax
import jax.numpy as jnp
from jax import lax
from jax.experimental import pallas as pl
from jax.experimental.pallas import tpu as pltpu

NORM_EPS = 1e-12  # F.normalize default eps


# --------------------------------------------------------------------------- kernel
def _fused_head_kernel(x_ref, w1_ref, b1_ref, w2_ref, b2_ref, o_ref):
    """One (tm, feat_dim) output tile of l2_normalize(relu(x@W1+b1)@W2 + b2, axis=-1).

    x_ref:  (tm, K)  bf16      w1_ref: (K, K)  bf16 (resident)
    b1_ref: (1, K)   f32       w2_ref: (K, F)  bf16 (resident)
    b2_ref: (1, F)   f32       o_ref:  (tm, F)
    Both matmuls run on the native bf16 MXU path with f32 accumulation; the
    intermediate h lives only in VMEM/vregs (no HBM round-trip).
    """
    h = jnp.dot(x_ref[...], w1_ref[...], preferred_element_type=jnp.float32)
    h = jnp.maximum(h + b1_ref[...], 0.0)

    z = jnp.dot(h.astype(w2_ref.dtype), w2_ref[...],
                preferred_element_type=jnp.float32)
    z = z + b2_ref[...]

    # F.normalize(dim=1):  z / max(||z||, eps)  ==  z * rsqrt(max(||z||^2, eps^2))
    sq = jnp.sum(z * z, axis=-1, keepdims=True)          # XLU cross-lane reduce
    inv = lax.rsqrt(jnp.maximum(sq, NORM_EPS * NORM_EPS))  # EUP slot
    o_ref[...] = (z * inv).astype(o_ref.dtype)


# --------------------------------------------------------------------------- wrapper
def supcon_head_forward(feat, w1, b1, w2, b2, *, tm=256):
    """Fused 'mlp' head + F.normalize(dim=1) on encoder features.

    feat: (M, K), w1: (K, K), b1: (K,), w2: (K, F), b2: (F,).
    """
    M, K = feat.shape
    Kw1, K1 = w1.shape
    Kw2, F = w2.shape
    assert K == Kw1 == K1 == Kw2 and b1.shape == (K,) and b2.shape == (F,)

    # --- choose the M tile: multiple of 8 (f32 sublane), >= 2 grid programs when
    #     the batch allows (v7x has 2 TensorCores sharding the "parallel" axis).
    tm = max(8, min(tm, ((M + 7) // 8) * 8))
    tm = (tm // 8) * 8
    if (M + tm - 1) // tm < 2 and M > 8:
        tm = max(8, (((M + 1) // 2 + 7) // 8) * 8)
    Mp = ((M + tm - 1) // tm) * tm

    # --- dtypes: bf16 operands for the MXU, f32 biases / accumulation.
    x = feat.astype(jnp.bfloat16)
    if Mp != M:
        x = jnp.pad(x, ((0, Mp - M), (0, 0)))
    w1b = w1.astype(jnp.bfloat16)
    w2b = w2.astype(jnp.bfloat16)
    b1_2d = b1.reshape(1, K).astype(jnp.float32)
    b2_2d = b2.reshape(1, F).astype(jnp.float32)

    # --- VMEM budget: resident bf16 weights + double-buffered x/out tiles + h + slack.
    est = (w1b.size + w2b.size) * 2            # resident weights (bf16)
    est += 2 * tm * K * 2                      # double-buffered x tile (bf16)
    est += 2 * tm * F * feat.dtype.itemsize    # double-buffered out tile
    est += tm * K * 4 + tm * F * 4             # h and z temporaries (f32)
    est += (K + F) * 4 + (1 << 20)             # biases + slack
    vmem_limit = int(min(48 * 2**20, max(8 * 2**20, 2 * est)))  # below v7x 64 MiB

    out = pl.pallas_call(
        _fused_head_kernel,
        out_shape=jax.ShapeDtypeStruct((Mp, F), feat.dtype),
        grid_spec=pltpu.PrefetchScalarGridSpec(
            num_scalar_prefetch=0,
            grid=(Mp // tm,),
            in_specs=[
                pl.BlockSpec((tm, K), lambda i: (i, 0)),   # x tile streams over M
                pl.BlockSpec((K, K), lambda i: (0, 0)),    # W1 resident
                pl.BlockSpec((1, K), lambda i: (0, 0)),    # b1 resident
                pl.BlockSpec((K, F), lambda i: (0, 0)),    # W2 resident
                pl.BlockSpec((1, F), lambda i: (0, 0)),    # b2 resident
            ],
            out_specs=pl.BlockSpec((tm, F), lambda i: (i, 0)),
        ),
        compiler_params=pltpu.CompilerParams(
            dimension_semantics=("parallel",),
            vmem_limit_bytes=vmem_limit,
        ),
    )(x, w1b, b1_2d, w2b, b2_2d)

    return out[:M]


# --------------------------------------------------------------------------- reference
def _reference(feat, w1, b1, w2, b2):
    """Pure-JAX reference mirroring the kernel's bf16-operand / f32-accumulate path."""
    xb = feat.astype(jnp.bfloat16)
    w1b = w1.astype(jnp.bfloat16)
    w2b = w2.astype(jnp.bfloat16)
    h = jnp.maximum(
        jnp.dot(xb, w1b, preferred_element_type=jnp.float32) + b1, 0.0)
    z = jnp.dot(h.astype(jnp.bfloat16), w2b,
                preferred_element_type=jnp.float32) + b2
    norm = jnp.sqrt(jnp.sum(z * z, axis=1, keepdims=True))
    return (z / jnp.maximum(norm, NORM_EPS)).astype(feat.dtype)


if __name__ == "__main__":
    key = jax.random.PRNGKey(0)
    k_feat, k_w1, k_b1, k_w2, k_b2 = jax.random.split(key, 5)

    # Small but representative shapes: feat_dim=128 as in the spec, dim_in shrunk
    # 2000 -> 256 for the demo, batch=16 (non-trivial so the M axis has 2 programs).
    N, DIM_IN, FEAT_DIM = 16, 256, 128

    feat = jax.random.normal(k_feat, (N, DIM_IN), dtype=jnp.float32)  # encoder stand-in
    w1 = 0.05 * jax.random.normal(k_w1, (DIM_IN, DIM_IN), dtype=jnp.float32)
    b1 = 0.05 * jax.random.normal(k_b1, (DIM_IN,), dtype=jnp.float32)
    w2 = 0.05 * jax.random.normal(k_w2, (DIM_IN, FEAT_DIM), dtype=jnp.float32)
    b2 = 0.05 * jax.random.normal(k_b2, (FEAT_DIM,), dtype=jnp.float32)

    out = supcon_head_forward(feat, w1, b1, w2, b2)
    out = jax.block_until_ready(out)

    ref = _reference(feat, w1, b1, w2, b2)
    assert out.shape == (N, FEAT_DIM)
    assert jnp.max(jnp.abs(out - ref)) < 2e-2, "mismatch vs reference"
    # Rows should be unit-norm.
    assert jnp.max(jnp.abs(jnp.sum(out.astype(jnp.float32) * out, axis=1) - 1.0)) < 1e-3

    print("KERNEL_OK")
</pallas_src>

<mosaic_0001>
module attributes {stable_mosaic.version = 11 : i64} {
  func.func @_fused_head_kernel(%arg0: i32, %arg1: memref<8x256xbf16, #tpu.memory_space<vmem>>, %arg2: memref<256x256xbf16, #tpu.memory_space<vmem>>, %arg3: memref<1x256xf32, #tpu.memory_space<vmem>>, %arg4: memref<256x128xbf16, #tpu.memory_space<vmem>>, %arg5: memref<1x128xf32, #tpu.memory_space<vmem>>, %arg6: memref<8x128xf32, #tpu.memory_space<vmem>>) attributes {dimension_semantics = [#tpu.dimension_semantics<parallel>], iteration_bounds = array<i64: 2>, scalar_prefetch = 0 : i64, scratch_operands = 0 : i64, tpu.core_type = #tpu.core_type<tc>, window_params = [{transform_indices = @transform_0, window_bounds = array<i64: 8, 256>}, {pipeline_mode = #tpu.pipeline_mode<synchronous>, transform_indices = @transform_1, window_bounds = array<i64: 256, 256>}, {pipeline_mode = #tpu.pipeline_mode<synchronous>, transform_indices = @transform_2, window_bounds = array<i64: 1, 256>}, {pipeline_mode = #tpu.pipeline_mode<synchronous>, transform_indices = @transform_3, window_bounds = array<i64: 256, 128>}, {pipeline_mode = #tpu.pipeline_mode<synchronous>, transform_indices = @transform_4, window_bounds = array<i64: 1, 128>}, {transform_indices = @transform_5, window_bounds = array<i64: 8, 128>}]} {
    %c0 = arith.constant 0 : index
    %c0_0 = arith.constant 0 : index
    %0 = vector.load %arg1[%c0, %c0_0] : memref<8x256xbf16, #tpu.memory_space<vmem>>, vector<8x256xbf16>
    %c0_1 = arith.constant 0 : index
    %c0_2 = arith.constant 0 : index
    %1 = vector.load %arg2[%c0_1, %c0_2] : memref<256x256xbf16, #tpu.memory_space<vmem>>, vector<256x256xbf16>
    %cst = arith.constant dense<0.000000e+00> : vector<8x256xf32>
    %2 = tpu.matmul %0, %1, %cst {dimension_numbers = #tpu.dot_dimension_numbers<[1], [0], [0], [1], [0, 0, 1, 1], [], []>} : vector<8x256xbf16>, vector<256x256xbf16>, vector<8x256xf32> -> vector<8x256xf32>
    %c0_3 = arith.constant 0 : index
    %c0_4 = arith.constant 0 : index
    %3 = vector.load %arg3[%c0_3, %c0_4] : memref<1x256xf32, #tpu.memory_space<vmem>>, vector<1x256xf32>
    %4 = vector.broadcast %3 : vector<1x256xf32> to vector<8x256xf32>
    %5 = arith.addf %2, %4 : vector<8x256xf32>
    %cst_5 = arith.constant 0.000000e+00 : f32
    %6 = vector.broadcast %cst_5 : f32 to vector<8x256xf32>
    %7 = arith.maximumf %5, %6 : vector<8x256xf32>
    %8 = arith.truncf %7 : vector<8x256xf32> to vector<8x256xbf16>
    %c0_6 = arith.constant 0 : index
    %c0_7 = arith.constant 0 : index
    %9 = vector.load %arg4[%c0_6, %c0_7] : memref<256x128xbf16, #tpu.memory_space<vmem>>, vector<256x128xbf16>
    %cst_8 = arith.constant dense<0.000000e+00> : vector<8x128xf32>
    %10 = tpu.matmul %8, %9, %cst_8 {dimension_numbers = #tpu.dot_dimension_numbers<[1], [0], [0], [1], [0, 0, 1, 1], [], []>} : vector<8x256xbf16>, vector<256x128xbf16>, vector<8x128xf32> -> vector<8x128xf32>
    %c0_9 = arith.constant 0 : index
    %c0_10 = arith.constant 0 : index
    %11 = vector.load %arg5[%c0_9, %c0_10] : memref<1x128xf32, #tpu.memory_space<vmem>>, vector<1x128xf32>
    %12 = vector.broadcast %11 : vector<1x128xf32> to vector<8x128xf32>
    %13 = arith.addf %10, %12 : vector<8x128xf32>
    %14 = arith.mulf %13, %13 : vector<8x128xf32>
    %cst_11 = arith.constant dense<0.000000e+00> : vector<8xf32>
    %15 = vector.multi_reduction <add>, %14, %cst_11 [1] : vector<8x128xf32> to vector<8xf32>
    %16 = vector.shape_cast %15 : vector<8xf32> to vector<8x1xf32>
    %cst_12 = arith.constant 1.000000e-24 : f32
    %17 = vector.broadcast %cst_12 : f32 to vector<8x1xf32>
    %18 = arith.maximumf %16, %17 : vector<8x1xf32>
    %19 = math.rsqrt %18 : vector<8x1xf32>
    %20 = vector.broadcast %19 : vector<8x1xf32> to vector<8x128xf32>
    %21 = arith.mulf %13, %20 : vector<8x128xf32>
    %c0_13 = arith.constant 0 : index
    %c0_14 = arith.constant 0 : index
    %22 = vector.load %arg6[%c0_13, %c0_14] : memref<8x128xf32, #tpu.memory_space<vmem>>, vector<8x128xf32>
    tpu.vector_store %arg6[%c0_13, %c0_14], %21 {strides = array<i32>} : memref<8x128xf32, #tpu.memory_space<vmem>>, vector<8x128xf32>,
    return
  }
  func.func @transform_0(%arg0: i32) -> (i32, i32) {
    %c0_i32 = arith.constant 0 : i32
    %c0_i32_0 = arith.constant 0 : i32
    return %arg0, %c0_i32 : i32, i32
  }
  func.func @transform_1(%arg0: i32) -> (i32, i32) {
    %c0_i32 = arith.constant 0 : i32
    %c0_i32_0 = arith.constant 0 : i32
    %c0_i32_1 = arith.constant 0 : i32
    return %c0_i32, %c0_i32_0 : i32, i32
  }
  func.func @transform_2(%arg0: i32) -> (i32, i32) {
    %c0_i32 = arith.constant 0 : i32
    %c0_i32_0 = arith.constant 0 : i32
    %c0_i32_1 = arith.constant 0 : i32
    return %c0_i32, %c0_i32_0 : i32, i32
  }
  func.func @transform_3(%arg0: i32) -> (i32, i32) {
    %c0_i32 = arith.constant 0 : i32
    %c0_i32_0 = arith.constant 0 : i32
    %c0_i32_1 = arith.constant 0 : i32
    return %c0_i32, %c0_i32_0 : i32, i32
  }
  func.func @transform_4(%arg0: i32) -> (i32, i32) {
    %c0_i32 = arith.constant 0 : i32
    %c0_i32_0 = arith.constant 0 : i32
    %c0_i32_1 = arith.constant 0 : i32
    return %c0_i32, %c0_i32_0 : i32, i32
  }
  func.func @transform_5(%arg0: i32) -> (i32, i32) {
    %c0_i32 = arith.constant 0 : i32
    %c0_i32_0 = arith.constant 0 : i32
    return %arg0, %c0_i32 : i32, i32
  }
}

</mosaic_0001>

<llo_original>
// kernel: tpu_custom_call.1
$region0: #{tpu_custom_call.1}
  #allocation0 [shape = 'u32[]', space=smem, size = 0x4, offset = 0x4, fixed_abs, tag = 'smem constant byte address 0x4 - core index']
  #allocation1 [shape = 'u32[72,128]{1,0:T(1,128)}', space=vmem, size = 0x9000, scoped, tag = 'internal scratch']
  %s0 = inlined_call_operand.hbm [shape: bf16[16,256], index: 0, kind: input, shape index: {}]
  %s1 = inlined_call_operand.hbm [shape: bf16[256,256], index: 1, kind: input, shape index: {}]
  %s2 = inlined_call_operand.hbm [shape: f32[1,256], index: 2, kind: input, shape index: {}]
  %s3 = inlined_call_operand.hbm [shape: bf16[256,128], index: 3, kind: input, shape index: {}]
  %s4 = inlined_call_operand.vmem [shape: f32[1,128], index: 4, kind: input, shape index: {}]
  %s5 = inlined_call_operand.hbm [shape: f32[16,128], index: 5, kind: output, shape index: {}]
  %s6 = sld [smem:[#allocation0]]
  $region69: #{tpu_custom_call.1} parent=0
    _
  %s8 = ssub.s32 1, %s6
  %s9 = scalar_select 0, %s8, %s6
  $region1: #{tpu_custom_call.1} parent=0
    #allocation2 [shape = 'u8[8192]{0}', space=vmem, size = 0x2000, scoped, tag = 'input window, operand 0']
    #allocation3 [shape = 's32[2]{0}', space=sflag, size = 0x8, scoped, tag = 'scoped memory for tpu_custom_call.1']
    #allocation4 [shape = 's32[2]{0}', space=sflag, size = 0x8, scoped, tag = 'scoped memory for tpu_custom_call.1']
    #allocation5 [shape = 'u8[131072]{0}', space=vmem, size = 0x20000, scoped, tag = 'input window, operand 1, single buffered']
    #allocation6 [shape = 's32[1]{0}', space=sflag, size = 0x4, scoped, tag = 'scoped memory for tpu_custom_call.1']
    #allocation7 [shape = 'u8[1024]{0}', space=vmem, size = 0x400, scoped, tag = 'input window, operand 2, single buffered']
    #allocation8 [shape = 'u8[65536]{0}', space=vmem, size = 0x10000, scoped, tag = 'input window, operand 3, single buffered']
    #allocation9 [shape = 's32[1]{0}', space=sflag, size = 0x4, scoped, tag = 'scoped memory for tpu_custom_call.1']
    #allocation10 [shape = 'u8[8192]{0}', space=vmem, size = 0x2000, scoped, tag = 'output window, operand 0']
    %10 = vsyncpa [#allocation3], 0
    %s11 = scalar_lea.sflag [#allocation3], 1
    %12 = vsyncpa %s11, 0
    %13 = vsyncpa [#allocation6], 0
    %14 = vsyncpa [#allocation9], 0
    %15 = vsyncpa [#allocation4], 0
    %s16 = scalar_lea.sflag [#allocation4], 1
    %17 = vsyncpa %s16, 0
    loop: start=0, step=1, limit=4
    $region2: #{tpu_custom_call.1} parent=1 // loop_pre_header
      _
    $region3: #{tpu_custom_call.1} parent=1 // loop_header
      %s19 = sphi 0, %s23
      %p20 = scmp.ge.s32.totalorder %s19, 4
      %s29 = sphi 0, %s31
      %s32 = sphi 0, %s29
      %s33 = sphi 0, %s32
      %s49 = sphi 0, %s33
      %s53 = sphi 0, %s53
      %s55 = sphi 0, %s53
      %s56 = sphi 0, %s55
      %s70 = sphi 0, %s56
      %s74 = sphi 0, %s74
      %s76 = sphi 0, %s74
      %s77 = sphi 0, %s76
      %s91 = sphi 0, %s77
      %s95 = sphi 0, %s95
      %s97 = sphi 0, %s95
      %s98 = sphi 0, %s97
      %s112 = sphi 0, %s98
      %s116 = sphi 0, %s116
      %s118 = sphi 0, %s116
      %s119 = sphi 0, %s118
      %s133 = sphi 0, %s119
      %s139 = sphi 0, %s141
      %s142 = sphi 0, %s139
      %s143 = sphi 0, %s142
      %s159 = sphi 0, %s143
    $region4: #{tpu_custom_call.1} parent=1 // loop_header_branch
      %22 = sbr.rel (%p20) target = $region8
    $region5: #{tpu_custom_call.1} parent=1 // loop_body
      %s24 = ssub.s32 %s19, 1
      %s25 = ssub.s32 %s19, 2
      %s26 = sadd.s32 %s19, 1
      %s27 = ssub.s32 %s19, %s26
      %p28 = scmp.eq.s32.totalorder %s27, 0
      %s30 = sadd.s32 %s29, 1
      %s31 = scalar_select %p28, %s29, %s30
      %p34 = pneg %p28
      %p35 = scmp.eq.s32.totalorder %s19, 1
      %p36 = por %p34, %p35
      %p37 = scmp.ne.s32.totalorder %s29, %s32
      %p38 = scmp.eq.s32.totalorder %s19, 0
      %p39 = por %p37, %p38
      %p40 = scmp.ne.s32.totalorder %s29, %s32
      %p41 = scmp.eq.s32.totalorder %s24, 1
      %p42 = por %p40, %p41
      %p43 = scmp.ne.s32.totalorder %s32, %s33
      %p44 = scmp.eq.s32.totalorder %s24, 0
      %p45 = por %p43, %p44
      %p46 = scmp.ne.s32.totalorder %s32, %s33
      %p47 = scmp.eq.s32.totalorder %s25, 1
      %p48 = por %p46, %p47
      %p50 = scmp.ne.s32.totalorder %s33, %s49
      %p51 = scmp.eq.s32.totalorder %s25, 0
      %p52 = por %p50, %p51
      %s54 = sadd.s32 %s53, 1
      %p57 = scmp.eq.s32.totalorder %s19, 1
      %p58 = scmp.ne.s32.totalorder %s53, %s55
      %p59 = scmp.eq.s32.totalorder %s19, 0
      %p60 = por %p58, %p59
      %p61 = scmp.ne.s32.totalorder %s53, %s55
      %p62 = scmp.eq.s32.totalorder %s24, 1
      %p63 = por %p61, %p62
      %p64 = scmp.ne.s32.totalorder %s55, %s56
      %p65 = scmp.eq.s32.totalorder %s24, 0
      %p66 = por %p64, %p65
      %p67 = scmp.ne.s32.totalorder %s55, %s56
      %p68 = scmp.eq.s32.totalorder %s25, 1
      %p69 = por %p67, %p68
      %p71 = scmp.ne.s32.totalorder %s56, %s70
      %p72 = scmp.eq.s32.totalorder %s25, 0
      %p73 = por %p71, %p72
      %s75 = sadd.s32 %s74, 1
      %p78 = scmp.eq.s32.totalorder %s19, 1
      %p79 = scmp.ne.s32.totalorder %s74, %s76
      %p80 = scmp.eq.s32.totalorder %s19, 0
      %p81 = por %p79, %p80
      %p82 = scmp.ne.s32.totalorder %s74, %s76
      %p83 = scmp.eq.s32.totalorder %s24, 1
      %p84 = por %p82, %p83
      %p85 = scmp.ne.s32.totalorder %s76, %s77
      %p86 = scmp.eq.s32.totalorder %s24, 0
      %p87 = por %p85, %p86
      %p88 = scmp.ne.s32.totalorder %s76, %s77
      %p89 = scmp.eq.s32.totalorder %s25, 1
      %p90 = por %p88, %p89
      %p92 = scmp.ne.s32.totalorder %s77, %s91
      %p93 = scmp.eq.s32.totalorder %s25, 0
      %p94 = por %p92, %p93
      %s96 = sadd.s32 %s95, 1
      %p99 = scmp.eq.s32.totalorder %s19, 1
      %p100 = scmp.ne.s32.totalorder %s95, %s97
      %p101 = scmp.eq.s32.totalorder %s19, 0
      %p102 = por %p100, %p101
      %p103 = scmp.ne.s32.totalorder %s95, %s97
      %p104 = scmp.eq.s32.totalorder %s24, 1
      %p105 = por %p103, %p104
      %p106 = scmp.ne.s32.totalorder %s97, %s98
      %p107 = scmp.eq.s32.totalorder %s24, 0
      %p108 = por %p106, %p107
      %p109 = scmp.ne.s32.totalorder %s97, %s98
      %p110 = scmp.eq.s32.totalorder %s25, 1
      %p111 = por %p109, %p110
      %p113 = scmp.ne.s32.totalorder %s98, %s112
      %p114 = scmp.eq.s32.totalorder %s25, 0
      %p115 = por %p113, %p114
      %s117 = sadd.s32 %s116, 1
      %p120 = scmp.eq.s32.totalorder %s19, 1
      %p121 = scmp.ne.s32.totalorder %s116, %s118
      %p122 = scmp.eq.s32.totalorder %s19, 0
      %p123 = por %p121, %p122
      %p124 = scmp.ne.s32.totalorder %s116, %s118
      %p125 = scmp.eq.s32.totalorder %s24, 1
      %p126 = por %p124, %p125
      %p127 = scmp.ne.s32.totalorder %s118, %s119
      %p128 = scmp.eq.s32.totalorder %s24, 0
      %p129 = por %p127, %p128
      %p130 = scmp.ne.s32.totalorder %s118, %s119
      %p131 = scmp.eq.s32.totalorder %s25, 1
      %p132 = por %p130, %p131
      %p134 = scmp.ne.s32.totalorder %s119, %s133
      %p135 = scmp.eq.s32.totalorder %s25, 0
      %p136 = por %p134, %p135
      %s137 = ssub.s32 %s19, %s26
      %p138 = scmp.eq.s32.totalorder %s137, 0
      %s140 = sadd.s32 %s139, 1
      %s141 = scalar_select %p138, %s139, %s140
      %p144 = pneg %p138
      %p145 = scmp.eq.s32.totalorder %s19, 1
      %p146 = por %p144, %p145
      %p147 = scmp.ne.s32.totalorder %s139, %s142
      %p148 = scmp.eq.s32.totalorder %s19, 0
      %p149 = por %p147, %p148
      %p150 = scmp.ne.s32.totalorder %s139, %s142
      %p151 = scmp.eq.s32.totalorder %s24, 1
      %p152 = por %p150, %p151
      %p153 = scmp.ne.s32.totalorder %s142, %s143
      %p154 = scmp.eq.s32.totalorder %s24, 0
      %p155 = por %p153, %p154
      %p156 = scmp.ne.s32.totalorder %s142, %s143
      %p157 = scmp.eq.s32.totalorder %s25, 1
      %p158 = por %p156, %p157
      %p160 = scmp.ne.s32.totalorder %s143, %s159
      %p161 = scmp.eq.s32.totalorder %s25, 0
      %p162 = por %p160, %p161
      %p163 = scmp.le.s32.totalorder 1, %s19
      %p164 = scmp.lt.s32.totalorder %s19, 3
      %p165 = pnand %p163, %p164
      %p166 = pneg %p165
      // Predicated region
      $region9: #{tpu_custom_call.1} parent=5 // pred_check
        _
      $region10: #{tpu_custom_call.1} parent=5 // pred_check_branch
        %168 = sbr.rel (%p165) target = $region12
      $region11: #{tpu_custom_call.1} parent=5 // pred_region
        %s169 = ssub.s32 %s19, 1
        // Predicated region
        $region13: #{tpu_custom_call.1} parent=11 // pred_check
          %p170 = pneg %p66
        $region14: #{tpu_custom_call.1} parent=11 // pred_check_branch
          %172 = sbr.rel (%p170) target = $region16
        $region15: #{tpu_custom_call.1} parent=11 // pred_region
          %174 = vsyncadd [#allocation6], 0
          %s175 = sshll.u32 %s1, 4
          %s176 = int_to_ptr.hbm [resolvable:$true] %s175
          %s177 = sshll.u32 [#allocation5], 4
          %s178 = int_to_ptr.vmem [resolvable:$true] %s177
          %183 = dma.hbm_to_vmem [thread:$0]  %s176, 4096, %s178, [#allocation6], 128, 128, 8
        $region16: #{tpu_custom_call.1} parent=11 // pred_fallthru
          _
        // Predicated region
        $region17: #{tpu_custom_call.1} parent=11 // pred_check
          %p184 = pneg %p87
        $region18: #{tpu_custom_call.1} parent=11 // pred_check_branch
          %186 = sbr.rel (%p184) target = $region20
        $region19: #{tpu_custom_call.1} parent=11 // pred_region
          %188 = vsyncadd [#allocation6], 0
          %s190 = sshll.u32 %s2, 4
          %s191 = int_to_ptr.hbm [resolvable:$true] %s190
          %s192 = sshll.u32 [#allocation7], 4
          %s193 = int_to_ptr.vmem [resolvable:$true] %s192
          %195 = dma.hbm_to_vmem [thread:$0]  %s191, 32, %s193, [#allocation6]
        $region20: #{tpu_custom_call.1} parent=11 // pred_fallthru
          _
        // Predicated region
        $region21: #{tpu_custom_call.1} parent=11 // pred_check
          %p196 = pneg %p108
        $region22: #{tpu_custom_call.1} parent=11 // pred_check_branch
          %198 = sbr.rel (%p196) target = $region24
        $region23: #{tpu_custom_call.1} parent=11 // pred_region
          %200 = vsyncadd [#allocation9], 0
          %s201 = sshll.u32 %s3, 4
          %s202 = int_to_ptr.hbm [resolvable:$true] %s201
          %s203 = sshll.u32 [#allocation8], 4
          %s204 = int_to_ptr.vmem [resolvable:$true] %s203
          %209 = dma.hbm_to_vmem [thread:$0]  %s202, 2048, %s204, [#allocation9], 64, 64, 4
        $region24: #{tpu_custom_call.1} parent=11 // pred_fallthru
          _
        // Predicated region
        $region25: #{tpu_custom_call.1} parent=11 // pred_check
          %p210 = pneg %p129
        $region26: #{tpu_custom_call.1} parent=11 // pred_check_branch
          %212 = sbr.rel (%p210) target = $region28
        $region27: #{tpu_custom_call.1} parent=11 // pred_region
          _
        $region28: #{tpu_custom_call.1} parent=11 // pred_fallthru
          _
      $region12: #{tpu_custom_call.1} parent=5 // pred_fallthru
        _
      %p213 = scmp.lt.s32.totalorder %s19, 2
      // Predicated region
      $region29: #{tpu_custom_call.1} parent=5 // pred_check
        %p214 = pneg %p213
      $region30: #{tpu_custom_call.1} parent=5 // pred_check_branch
        %216 = sbr.rel (%p214) target = $region32
      $region31: #{tpu_custom_call.1} parent=5 // pred_region
        // Predicated region
        $region33: #{tpu_custom_call.1} parent=31 // pred_check
          %p217 = pneg %p39
        $region34: #{tpu_custom_call.1} parent=31 // pred_check_branch
          %219 = sbr.rel (%p217) target = $region36
        $region35: #{tpu_custom_call.1} parent=31 // pred_region
          %s220 = sand.u32 %s29, 1
          %s221 = scalar_lea.sflag [#allocation3], %s220
          %s222 = sand.u32 %s29, 1
          %s223 = smul.addr %s222, 8
          %s224 = scalar_lea.vmem [#allocation2], %s223
          %226 = vsyncadd %s221, 0
          %s227 = smul.addr %s19, 2
          %s228 = smul.addr %s227, 4
          %s229 = scalar_lea.hbm %s0, %s228
          %s231 = sshll.u32 %s229, 4
          %s232 = int_to_ptr.hbm [resolvable:$true] %s231
          %s233 = sshll.u32 %s224, 4
          %s234 = int_to_ptr.vmem [resolvable:$true] %s233
          %236 = dma.hbm_to_vmem [thread:$0]  %s232, 128, %s234, %s221
        $region36: #{tpu_custom_call.1} parent=31 // pred_fallthru
          _
      $region32: #{tpu_custom_call.1} parent=5 // pred_fallthru
        _
      %p237 = scmp.le.s32.totalorder 1, %s19
      %p238 = scmp.lt.s32.totalorder %s19, 3
      %p239 = pnand %p237, %p238
      %p240 = pneg %p239
      // Predicated region
      $region37: #{tpu_custom_call.1} parent=5 // pred_check
        _
      $region38: #{tpu_custom_call.1} parent=5 // pred_check_branch
        %242 = sbr.rel (%p239) target = $region40
      $region39: #{tpu_custom_call.1} parent=5 // pred_region
        %s243 = ssub.s32 %s19, 1
        %s244 = sand.u32 %s32, 1
        %s245 = scalar_lea.sflag [#allocation3], %s244
        %s246 = sand.u32 %s32, 1
        %s247 = smul.addr %s246, 8
        %s248 = scalar_lea.vmem [#allocation2], %s247
        // Predicated region
        $region41: #{tpu_custom_call.1} parent=39 // pred_check
          %p249 = pneg %p45
        $region42: #{tpu_custom_call.1} parent=39 // pred_check_branch
          %251 = sbr.rel (%p249) target = $region44
        $region43: #{tpu_custom_call.1} parent=39 // pred_region
          %253 = dma.done %s245, 128
        $region44: #{tpu_custom_call.1} parent=39 // pred_fallthru
          _
        // Predicated region
        $region45: #{tpu_custom_call.1} parent=39 // pred_check
          %p254 = pneg %p66
        $region46: #{tpu_custom_call.1} parent=39 // pred_check_branch
          %256 = sbr.rel (%p254) target = $region48
        $region47: #{tpu_custom_call.1} parent=39 // pred_region
          %258 = dma.done [#allocation6], 4096
        $region48: #{tpu_custom_call.1} parent=39 // pred_fallthru
          _
        // Predicated region
        $region49: #{tpu_custom_call.1} parent=39 // pred_check
          %p259 = pneg %p87
        $region50: #{tpu_custom_call.1} parent=39 // pred_check_branch
          %261 = sbr.rel (%p259) target = $region52
        $region51: #{tpu_custom_call.1} parent=39 // pred_region
          %263 = dma.done [#allocation6], 32
        $region52: #{tpu_custom_call.1} parent=39 // pred_fallthru
          _
        // Predicated region
        $region53: #{tpu_custom_call.1} parent=39 // pred_check
          %p264 = pneg %p108
        $region54: #{tpu_custom_call.1} parent=39 // pred_check_branch
          %266 = sbr.rel (%p264) target = $region56
        $region55: #{tpu_custom_call.1} parent=39 // pred_region
          %268 = dma.done [#allocation9], 2048
        $region56: #{tpu_custom_call.1} parent=39 // pred_fallthru
          _
        %s269 = sand.u32 %s32, 1
        %s270 = scalar_lea.sflag [#allocation3], %s269
        %s271 = sand.u32 %s32, 1
        %s272 = smul.addr %s271, 8
        %s273 = scalar_lea.vmem [#allocation2], %s272
        %p274 = pneg %p45
        %p275 = pneg %p42
        %p276 = pneg %p66
        %p277 = pneg %p63
        %p278 = pneg %p87
        %p279 = pneg %p84
        %p280 = pneg %p108
        %p281 = pneg %p105
        %p282 = pneg %p129
        %p283 = pneg %p126
        %p284 = pneg %p155
        %p285 = pneg %p152
        %s286 = sand.u32 %s142, 1
        %s287 = scalar_lea.sflag [#allocation4], %s286
        %s288 = sand.u32 %s142, 1
        %s289 = smul.addr %s288, 8
        %s290 = scalar_lea.vmem [#allocation10], %s289
        %v291 = vld [vmem:[%s248] sm:$0xff]
        %v292 = vld [vmem:[#allocation5] sm:$0xff]
        %v293 = vld [vmem:[#allocation5 + $0x8] sm:$0xff]
        %v294 = vld [vmem:[#allocation5 + $0x10] sm:$0xff]
        %v295 = vld [vmem:[#allocation5 + $0x18] sm:$0xff]
        %v296 = vld [vmem:[#allocation5 + $0x20] sm:$0xff]
        %v297 = vld [vmem:[#allocation5 + $0x28] sm:$0xff]
        %v298 = vld [vmem:[#allocation5 + $0x30] sm:$0xff]
        %v299 = vld [vmem:[#allocation5 + $0x38] sm:$0xff]
        %v300 = vld [vmem:[#allocation5 + $0x40] sm:$0xff]
        %v301 = vld [vmem:[#allocation5 + $0x48] sm:$0xff]
        %v302 = vld [vmem:[#allocation5 + $0x50] sm:$0xff]
        %v303 = vld [vmem:[#allocation5 + $0x58] sm:$0xff]
        %v304 = vld [vmem:[#allocation5 + $0x60] sm:$0xff]
        %v305 = vld [vmem:[#allocation5 + $0x68] sm:$0xff]
        %v306 = vld [vmem:[#allocation5 + $0x70] sm:$0xff]
        %v307 = vld [vmem:[#allocation5 + $0x78] sm:$0xff]
        %v308 = vld [vmem:[#allocation5 + $0x80] sm:$0xff]
        %v309 = vld [vmem:[#allocation5 + $0x88] sm:$0xff]
        %v310 = vld [vmem:[#allocation5 + $0x90] sm:$0xff]
        %v311 = vld [vmem:[#allocation5 + $0x98] sm:$0xff]
        %v312 = vld [vmem:[#allocation5 + $0xa0] sm:$0xff]
        %v313 = vld [vmem:[#allocation5 + $0xa8] sm:$0xff]
        %v314 = vld [vmem:[#allocation5 + $0xb0] sm:$0xff]
        %v315 = vld [vmem:[#allocation5 + $0xb8] sm:$0xff]
        %v316 = vld [vmem:[#allocation5 + $0xc0] sm:$0xff]
        %v317 = vld [vmem:[#allocation5 + $0xc8] sm:$0xff]
        %v318 = vld [vmem:[#allocation5 + $0xd0] sm:$0xff]
        %v319 = vld [vmem:[#allocation5 + $0xd8] sm:$0xff]
        %v320 = vld [vmem:[#allocation5 + $0xe0] sm:$0xff]
        %v321 = vld [vmem:[#allocation5 + $0xe8] sm:$0xff]
        %v322 = vld [vmem:[#allocation5 + $0xf0] sm:$0xff]
        %v323 = vld [vmem:[#allocation5 + $0xf8] sm:$0xff]
        %v324 = vld [vmem:[#allocation7] sm:$0x3]
        %v326 = vperm.slane %v324, 0
        %v327 = vperm.slane %v324, 1
        %v331 = vunpack.c.l.b16 %v291
        %v332 = vunpack.c.h.b16 %v291
        %v333 = vpack.c.b16 %v331, %v331
        %v334 = vpack.c.b16 %v332, %v332
        %v369 = vunpack.c.l.b16 %v292
        %v370 = vunpack.c.h.b16 %v292
        %v371 = vunpack.c.l.b16 %v293
        %v372 = vunpack.c.h.b16 %v293
        %v373 = vunpack.c.l.b16 %v294
        %v374 = vunpack.c.h.b16 %v294
        %v375 = vunpack.c.l.b16 %v295
        %v376 = vunpack.c.h.b16 %v295
        %v377 = vunpack.c.l.b16 %v296
        %v378 = vunpack.c.h.b16 %v296
        %v379 = vunpack.c.l.b16 %v297
        %v380 = vunpack.c.h.b16 %v297
        %v381 = vunpack.c.l.b16 %v298
        %v382 = vunpack.c.h.b16 %v298
        %v383 = vunpack.c.l.b16 %v299
        %v384 = vunpack.c.h.b16 %v299
        %v385 = vunpack.c.l.b16 %v300
        %v386 = vunpack.c.h.b16 %v300
        %v387 = vunpack.c.l.b16 %v301
        %v388 = vunpack.c.h.b16 %v301
        %v389 = vunpack.c.l.b16 %v302
        %v390 = vunpack.c.h.b16 %v302
        %v391 = vunpack.c.l.b16 %v303
        %v392 = vunpack.c.h.b16 %v303
        %v393 = vunpack.c.l.b16 %v304
        %v394 = vunpack.c.h.b16 %v304
        %v395 = vunpack.c.l.b16 %v305
        %v396 = vunpack.c.h.b16 %v305
        %v397 = vunpack.c.l.b16 %v306
        %v398 = vunpack.c.h.b16 %v306
        %v399 = vunpack.c.l.b16 %v307
        %v400 = vunpack.c.h.b16 %v307
        %v401 = vunpack.c.l.b16 %v308
        %v402 = vunpack.c.h.b16 %v308
        %v403 = vunpack.c.l.b16 %v309
        %v404 = vunpack.c.h.b16 %v309
        %v405 = vunpack.c.l.b16 %v310
        %v406 = vunpack.c.h.b16 %v310
        %v407 = vunpack.c.l.b16 %v311
        %v408 = vunpack.c.h.b16 %v311
        %v409 = vunpack.c.l.b16 %v312
        %v410 = vunpack.c.h.b16 %v312
        %v411 = vunpack.c.l.b16 %v313
        %v412 = vunpack.c.h.b16 %v313
        %v413 = vunpack.c.l.b16 %v314
        %v414 = vunpack.c.h.b16 %v314
        %v415 = vunpack.c.l.b16 %v315
        %v416 = vunpack.c.h.b16 %v315
        %v417 = vunpack.c.l.b16 %v316
        %v418 = vunpack.c.h.b16 %v316
        %v419 = vunpack.c.l.b16 %v317
        %v420 = vunpack.c.h.b16 %v317
        %v421 = vunpack.c.l.b16 %v318
        %v422 = vunpack.c.h.b16 %v318
        %v423 = vunpack.c.l.b16 %v319
        %v424 = vunpack.c.h.b16 %v319
        %v425 = vunpack.c.l.b16 %v320
        %v426 = vunpack.c.h.b16 %v320
        %v427 = vunpack.c.l.b16 %v321
        %v428 = vunpack.c.h.b16 %v321
        %v429 = vunpack.c.l.b16 %v322
        %v430 = vunpack.c.h.b16 %v322
        %v431 = vunpack.c.l.b16 %v323
        %v432 = vunpack.c.h.b16 %v323
        %v433 = vpack.c.b16 %v371, %v369
        %v434 = vpack.c.b16 %v372, %v370
        %v435 = vpack.c.b16 %v375, %v373
        %v436 = vpack.c.b16 %v376, %v374
        %v437 = vpack.c.b16 %v379, %v377
        %v438 = vpack.c.b16 %v380, %v378
        %v439 = vpack.c.b16 %v383, %v381
        %v440 = vpack.c.b16 %v384, %v382
        %v441 = vpack.c.b16 %v387, %v385
        %v442 = vpack.c.b16 %v388, %v386
        %v443 = vpack.c.b16 %v391, %v389
        %v444 = vpack.c.b16 %v392, %v390
        %v445 = vpack.c.b16 %v395, %v393
        %v446 = vpack.c.b16 %v396, %v394
        %v447 = vpack.c.b16 %v399, %v397
        %v448 = vpack.c.b16 %v400, %v398
        %v449 = vpack.c.b16 %v403, %v401
        %v450 = vpack.c.b16 %v404, %v402
        %v451 = vpack.c.b16 %v407, %v405
        %v452 = vpack.c.b16 %v408, %v406
        %v453 = vpack.c.b16 %v411, %v409
        %v454 = vpack.c.b16 %v412, %v410
        %v455 = vpack.c.b16 %v415, %v413
        %v456 = vpack.c.b16 %v416, %v414
        %v457 = vpack.c.b16 %v419, %v417
        %v458 = vpack.c.b16 %v420, %v418
        %v459 = vpack.c.b16 %v423, %v421
        %v460 = vpack.c.b16 %v424, %v422
        %v461 = vpack.c.b16 %v427, %v425
        %v462 = vpack.c.b16 %v428, %v426
        %v463 = vpack.c.b16 %v431, %v429
        %v464 = vpack.c.b16 %v432, %v430
        %497 = vmatpush.bf16.msra.mxu0 %v447
        %498 = vmatpush.bf16.msra.mxu0 %v445
        %499 = vmatpush.bf16.msra.mxu0 %v443
        %500 = vmatpush.bf16.msra.mxu0 %v441
        %501 = vmatpush.bf16.msra.mxu0 %v439
        %502 = vmatpush.bf16.msra.mxu0 %v437
        %503 = vmatpush.bf16.msra.mxu0 %v435
        %504 = vmatpush.bf16.msra.mxu0 %v433
        %505 = vmatmul.bf16.gmra.mxu0 %v333
        %v506 = vpop.f32.mrf.mxu0
        %v507 = vadd.f32 %v326, %v506
        %v508 = vpop.f32.mrf.mxu0
        %509 = vdwg.mxu0
        %510 = vmatpush.bf16.msra.mxu0 %v463
        %511 = vmatpush.bf16.msra.mxu0 %v461
        %512 = vmatpush.bf16.msra.mxu0 %v459
        %513 = vmatpush.bf16.msra.mxu0 %v457
        %514 = vmatpush.bf16.msra.mxu0 %v455
        %515 = vmatpush.bf16.msra.mxu0 %v453
        %516 = vmatpush.bf16.msra.mxu0 %v451
        %517 = vmatpush.bf16.msra.mxu0 %v449
        %518 = vmatmul.bf16.gmra.mxu0 %v334
        %v519 = vpop.f32.mrf.mxu0
        %v520 = vadd.f32 %v507, %v519
        %v521 = vpop.f32.mrf.mxu0
        %522 = vdwg.mxu0
        %523 = vmatpush.bf16.msra.mxu0 %v448
        %524 = vmatpush.bf16.msra.mxu0 %v446
        %525 = vmatpush.bf16.msra.mxu0 %v444
        %526 = vmatpush.bf16.msra.mxu0 %v442
        %527 = vmatpush.bf16.msra.mxu0 %v440
        %528 = vmatpush.bf16.msra.mxu0 %v438
        %529 = vmatpush.bf16.msra.mxu0 %v436
        %530 = vmatpush.bf16.msra.mxu0 %v434
        %531 = vmatmul.bf16.gmra.mxu0 %v333
        %v532 = vpop.f32.mrf.mxu0
        %v533 = vadd.f32 %v327, %v532
        %v534 = vpop.f32.mrf.mxu0
        %535 = vdwg.mxu0
        %536 = vmatpush.bf16.msra.mxu0 %v464
        %537 = vmatpush.bf16.msra.mxu0 %v462
        %538 = vmatpush.bf16.msra.mxu0 %v460
        %539 = vmatpush.bf16.msra.mxu0 %v458
        %540 = vmatpush.bf16.msra.mxu0 %v456
        %541 = vmatpush.bf16.msra.mxu0 %v454
        %542 = vmatpush.bf16.msra.mxu0 %v452
        %543 = vmatpush.bf16.msra.mxu0 %v450
        %544 = vmatmul.bf16.gmra.mxu0 %v334
        %v545 = vpop.f32.mrf.mxu0
        %v546 = vadd.f32 %v533, %v545
        %v547 = vpop.f32.mrf.mxu0
        %548 = vdwg.mxu0
        %v549 = vmax.f32 %v520, 0.0
        %v550 = vmax.f32 %v546, 0.0
        %v551 = vpack.c.bf16 %v549, %v549
        %v552 = vpack.c.bf16 %v550, %v550
        %v553 = vld [vmem:[#allocation8] sm:$0xf]
        %v554 = vld [vmem:[#allocation8 + $0x4] sm:$0xf]
        %v555 = vld [vmem:[#allocation8 + $0x8] sm:$0xf]
        %v556 = vld [vmem:[#allocation8 + $0xc] sm:$0xf]
        %v557 = vld [vmem:[#allocation8 + $0x10] sm:$0xf]
        %v558 = vld [vmem:[#allocation8 + $0x14] sm:$0xf]
        %v559 = vld [vmem:[#allocation8 + $0x18] sm:$0xf]
        %v560 = vld [vmem:[#allocation8 + $0x1c] sm:$0xf]
        %v561 = vld [vmem:[#allocation8 + $0x20] sm:$0xf]
        %v562 = vld [vmem:[#allocation8 + $0x24] sm:$0xf]
        %v563 = vld [vmem:[#allocation8 + $0x28] sm:$0xf]
        %v564 = vld [vmem:[#allocation8 + $0x2c] sm:$0xf]
        %v565 = vld [vmem:[#allocation8 + $0x30] sm:$0xf]
        %v566 = vld [vmem:[#allocation8 + $0x34] sm:$0xf]
        %v567 = vld [vmem:[#allocation8 + $0x38] sm:$0xf]
        %v568 = vld [vmem:[#allocation8 + $0x3c] sm:$0xf]
        %v569 = vld [vmem:[#allocation8 + $0x40] sm:$0xf]
        %v570 = vld [vmem:[#allocation8 + $0x44] sm:$0xf]
        %v571 = vld [vmem:[#allocation8 + $0x48] sm:$0xf]
        %v572 = vld [vmem:[#allocation8 + $0x4c] sm:$0xf]
        %v573 = vld [vmem:[#allocation8 + $0x50] sm:$0xf]
        %v574 = vld [vmem:[#allocation8 + $0x54] sm:$0xf]
        %v575 = vld [vmem:[#allocation8 + $0x58] sm:$0xf]
        %v576 = vld [vmem:[#allocation8 + $0x5c] sm:$0xf]
        %v577 = vld [vmem:[#allocation8 + $0x60] sm:$0xf]
        %v578 = vld [vmem:[#allocation8 + $0x64] sm:$0xf]
        %v579 = vld [vmem:[#allocation8 + $0x68] sm:$0xf]
        %v580 = vld [vmem:[#allocation8 + $0x6c] sm:$0xf]
        %v581 = vld [vmem:[#allocation8 + $0x70] sm:$0xf]
        %v582 = vld [vmem:[#allocation8 + $0x74] sm:$0xf]
        %v583 = vld [vmem:[#allocation8 + $0x78] sm:$0xf]
        %v584 = vld [vmem:[#allocation8 + $0x7c] sm:$0xf]
        %v585 = vld [vmem:[%s4] sm:$0x1]
        %v587 = vperm.slane %v585, 0
        %v621 = vunpack.c.l.b16 %v553
        %v622 = vunpack.c.l.b16 %v554
        %v623 = vunpack.c.l.b16 %v555
        %v624 = vunpack.c.l.b16 %v556
        %v625 = vunpack.c.l.b16 %v557
        %v626 = vunpack.c.l.b16 %v558
        %v627 = vunpack.c.l.b16 %v559
        %v628 = vunpack.c.l.b16 %v560
        %v629 = vunpack.c.l.b16 %v561
        %v630 = vunpack.c.l.b16 %v562
        %v631 = vunpack.c.l.b16 %v563
        %v632 = vunpack.c.l.b16 %v564
        %v633 = vunpack.c.l.b16 %v565
        %v634 = vunpack.c.l.b16 %v566
        %v635 = vunpack.c.l.b16 %v567
        %v636 = vunpack.c.l.b16 %v568
        %v637 = vunpack.c.l.b16 %v569
        %v638 = vunpack.c.l.b16 %v570
        %v639 = vunpack.c.l.b16 %v571
        %v640 = vunpack.c.l.b16 %v572
        %v641 = vunpack.c.l.b16 %v573
        %v642 = vunpack.c.l.b16 %v574
        %v643 = vunpack.c.l.b16 %v575
        %v644 = vunpack.c.l.b16 %v576
        %v645 = vunpack.c.l.b16 %v577
        %v646 = vunpack.c.l.b16 %v578
        %v647 = vunpack.c.l.b16 %v579
        %v648 = vunpack.c.l.b16 %v580
        %v649 = vunpack.c.l.b16 %v581
        %v650 = vunpack.c.l.b16 %v582
        %v651 = vunpack.c.l.b16 %v583
        %v652 = vunpack.c.l.b16 %v584
        %v653 = vpack.c.b16 %v622, %v621
        %v654 = vpack.c.b16 %v624, %v623
        %v655 = vpack.c.b16 %v626, %v625
        %v656 = vpack.c.b16 %v628, %v627
        %v657 = vpack.c.b16 %v630, %v629
        %v658 = vpack.c.b16 %v632, %v631
        %v659 = vpack.c.b16 %v634, %v633
        %v660 = vpack.c.b16 %v636, %v635
        %v661 = vpack.c.b16 %v638, %v637
        %v662 = vpack.c.b16 %v640, %v639
        %v663 = vpack.c.b16 %v642, %v641
        %v664 = vpack.c.b16 %v644, %v643
        %v665 = vpack.c.b16 %v646, %v645
        %v666 = vpack.c.b16 %v648, %v647
        %v667 = vpack.c.b16 %v650, %v649
        %v668 = vpack.c.b16 %v652, %v651
        %685 = vmatpush.bf16.msra.mxu0 %v660
        %686 = vmatpush.bf16.msra.mxu0 %v659
        %687 = vmatpush.bf16.msra.mxu0 %v658
        %688 = vmatpush.bf16.msra.mxu0 %v657
        %689 = vmatpush.bf16.msra.mxu0 %v656
        %690 = vmatpush.bf16.msra.mxu0 %v655
        %691 = vmatpush.bf16.msra.mxu0 %v654
        %692 = vmatpush.bf16.msra.mxu0 %v653
        %693 = vmatmul.bf16.gmra.mxu0 %v551
        %v694 = vpop.f32.mrf.mxu0
        %v695 = vadd.f32 %v587, %v694
        %v696 = vpop.f32.mrf.mxu0
        %697 = vdwg.mxu0
        %698 = vmatpush.bf16.msra.mxu0 %v668
        %699 = vmatpush.bf16.msra.mxu0 %v667
        %700 = vmatpush.bf16.msra.mxu0 %v666
        %701 = vmatpush.bf16.msra.mxu0 %v665
        %702 = vmatpush.bf16.msra.mxu0 %v664
        %703 = vmatpush.bf16.msra.mxu0 %v663
        %704 = vmatpush.bf16.msra.mxu0 %v662
        %705 = vmatpush.bf16.msra.mxu0 %v661
        %706 = vmatmul.bf16.gmra.mxu0 %v552
        %v707 = vpop.f32.mrf.mxu0
        %v708 = vadd.f32 %v695, %v707
        %v709 = vpop.f32.mrf.mxu0
        %710 = vdwg.mxu0
        %v711 = vmul.f32 %v708, %v708
        %712 = vadd.xlane.f32.xlu0 %v711
        %v713 = vpop.xlane.xlu0 %712
        %v714 = vmax.f32 %v713, 1e-24
        %v715 = vrsqrt.pop %v714
        %v716 = vmul.f32 %v715, %v714
        %v717 = vmul.f32 %v716, %v715
        %v718 = vmul.f32 0.5, %v717
        %v719 = vsub.f32 1.5, %v718
        %v720 = vmul.f32 %v715, %v719
        %vm721 = vweird.f32 %v714
        %vm722 = vweird.f32 %v715
        %vm723 = vmor %vm721, %vm722
        %v724 = vsel %vm723, %v715, %v720
        %v725 = vmul.f32 %v708, %v724
        %726 = vst [vmem:[%s290] sm:$0xff] %v725
        %s727 = sand.u32 %s142, 1
        %s728 = scalar_lea.sflag [#allocation4], %s727
        %s729 = sand.u32 %s142, 1
        %s730 = smul.addr %s729, 8
        %s731 = scalar_lea.vmem [#allocation10], %s730
        // Predicated region
        $region57: #{tpu_custom_call.1} parent=39 // pred_check
          %p732 = pneg %p152
        $region58: #{tpu_custom_call.1} parent=39 // pred_check_branch
          %734 = sbr.rel (%p732) target = $region60
        $region59: #{tpu_custom_call.1} parent=39 // pred_region
          %736 = vsyncadd %s728, 0
          %s737 = smul.addr %s24, 8
          %s738 = scalar_lea.hbm %s5, %s737
          %s740 = sshll.u32 %s731, 4
          %s741 = int_to_ptr.vmem [resolvable:$true] %s740
          %s742 = sshll.u32 %s738, 4
          %s743 = int_to_ptr.hbm [resolvable:$true] %s742
          %745 = dma.vmem_to_hbm [thread:$0]  %s741, 128, %s743, %s728
        $region60: #{tpu_custom_call.1} parent=39 // pred_fallthru
          _
      $region40: #{tpu_custom_call.1} parent=5 // pred_fallthru
        _
      %p746 = scmp.le.s32.totalorder 2, %s19
      // Predicated region
      $region61: #{tpu_custom_call.1} parent=5 // pred_check
        %p747 = pneg %p746
      $region62: #{tpu_custom_call.1} parent=5 // pred_check_branch
        %749 = sbr.rel (%p747) target = $region64
      $region63: #{tpu_custom_call.1} parent=5 // pred_region
        %s750 = ssub.s32 %s19, 2
        // Predicated region
        $region65: #{tpu_custom_call.1} parent=63 // pred_check
          %p751 = pneg %p158
        $region66: #{tpu_custom_call.1} parent=63 // pred_check_branch
          %753 = sbr.rel (%p751) target = $region68
        $region67: #{tpu_custom_call.1} parent=63 // pred_region
          %s754 = sand.u32 %s143, 1
          %s755 = scalar_lea.sflag [#allocation4], %s754
          %s756 = sand.u32 %s143, 1
          %s757 = smul.addr %s756, 8
          %s758 = scalar_lea.vmem [#allocation10], %s757
          %760 = dma.done %s755, 128
        $region68: #{tpu_custom_call.1} parent=63 // pred_fallthru
          _
      $region64: #{tpu_custom_call.1} parent=5 // pred_fallthru
        _
    $region6: #{tpu_custom_call.1} parent=1 // loop_footer
      %s23 = sadd.s32 1, %s19
    $region7: #{tpu_custom_call.1} parent=1 // loop_footer_branch
      %18 = sbr.rel target = $region3
    $region8: #{tpu_custom_call.1} parent=1 // loop_exit
      _
    %761 = vsyncpa [#allocation3], 1
    %s762 = scalar_lea.sflag [#allocation3], 1
    %763 = vsyncpa %s762, 1
    %764 = vsyncpa [#allocation6], 1
    %765 = vsyncpa [#allocation9], 1
    %766 = vsyncpa [#allocation4], 1
    %s767 = scalar_lea.sflag [#allocation4], 1
    %768 = vsyncpa %s767, 1

</llo_original>
